<compile_context>
chip_gen: v6e
topology: v6e:2x2x1
jax: 0.10.0
libtpu: 0.0.40
codegen_flags: <defaults>
</compile_context>

<pallas_src>
import functools
import math

import jax
import jax.numpy as jnp
from jax.experimental import pallas as pl
from jax.experimental.pallas import tpu as pltpu


# ----------------------------------------------------------------------------
# Kernel: residual add of a batch-invariant PE tile onto a (bB, tR, W) x tile.
# ----------------------------------------------------------------------------
def _add_pe_kernel(pe_ref, x_ref, o_ref):
    # pe_ref: (tR, W)       -- reused across the (innermost) batch grid axis
    # x_ref / o_ref: (bB, tR, W)
    pe = pe_ref[...].astype(jnp.float32)[None, :, :]
    o_ref[...] = (x_ref[...].astype(jnp.float32) + pe).astype(o_ref.dtype)


# ----------------------------------------------------------------------------
# Helpers
# ----------------------------------------------------------------------------
@functools.lru_cache(maxsize=None)
def _pe_table_cached(rows: int, d_model: int, dtype_str: str):
    """Sinusoidal table (rows, d_model). Cached so it is built once per shape."""
    position = jnp.arange(rows, dtype=jnp.float32)[:, None]
    denominator = jnp.exp(jnp.arange(0, d_model, 2, dtype=jnp.float32)
                          * (-math.log(10000.0) / d_model))
    angle = position * denominator                        # (rows, ceil(D/2))
    pe = jnp.zeros((rows, d_model), jnp.float32)
    pe = pe.at[:, 0::2].set(jnp.sin(angle))
    pe = pe.at[:, 1::2].set(jnp.cos(angle)[:, : d_model // 2])   # odd-D safe
    dtype = jnp.dtype(dtype_str)
    if dtype.itemsize < 4:
        pe = pe.astype(dtype)            # halve PE HBM traffic for narrow x
    return pe


def _vmem_capacity_bytes() -> int:
    try:
        return int(pltpu.get_tpu_info().vmem_capacity_bytes)
    except Exception:
        return 0


def _hw_defaults():
    """(block_target_bytes, vmem_limit_bytes) per TPU generation."""
    cap = _vmem_capacity_bytes()
    if cap and cap <= (64 << 20):        # v7x-class: 64 MiB VMEM, fast HBM
        return 8 << 20, 56 << 20
    if cap >= (100 << 20):               # v5e / v6e: 128 MiB VMEM
        return 4 << 20, 64 << 20
    return 4 << 20, 48 << 20             # unknown: conservative, fits everywhere


def _choose_tiles(R, B, W, itemsize, pack, target_bytes):
    """Pick (row tile tR, batch tile bB) targeting ~target_bytes per x block."""
    row_bytes = W * itemsize
    if R % pack == 0 and R > pack:
        max_rows = max(pack, target_bytes // max(row_bytes, 1))
        tR = pack
        for cand in range(pack, R + 1, pack):
            if R % cand == 0 and cand <= max_rows:
                tR = cand
    else:
        tR = R                           # full extent (valid BlockSpec dim)
    bB = 1
    if tR == R:                          # whole (fused) sequence fits one block
        blk = R * row_bytes
        if blk < target_bytes:           # small S*D, large B -> block over batch
            max_b = max(1, target_bytes // max(blk, 1))
            for cand in range(1, B + 1):
                if B % cand == 0 and cand <= max_b:
                    bB = cand
    return tR, bB


# ----------------------------------------------------------------------------
# Public wrapper
# ----------------------------------------------------------------------------
def positional_embedding(x: jax.Array, seq_len: int, d_model: int,
                         dropout: float = 0.0,
                         block_target_bytes: int | None = None) -> jax.Array:
    """x: (B, S, D) with S <= seq_len, D == d_model. Returns x + PE (eval mode)."""
    B, S, D = x.shape
    assert D == d_model and S <= seq_len
    del dropout                          # inference: nn.Dropout is identity

    itemsize = jnp.dtype(x.dtype).itemsize
    block_target, vmem_limit = _hw_defaults()
    if block_target_bytes is not None:
        block_target = block_target_bytes

    # --- lane-dense fusing: fuse k seq rows so the minor dim is k*D, a
    # multiple of 128.  Frequencies depend only on the full d_model, so this
    # is a pure layout change (PE reshapes identically).
    k = 128 // math.gcd(D, 128)
    pack = {4: 8, 2: 16, 1: 32}.get(itemsize, 8)     # sublane pack per dtype
    s_mult = k
    r_est = -(-S // k)
    if r_est * k * D * itemsize > block_target and r_est > pack:
        # Long sequence that will need row tiling: also make the fused row
        # axis a multiple of the sublane pack (never one giant block).
        s_mult = k * pack
    S_pad = -(-S // s_mult) * s_mult

    x_p = x if S_pad == S else jnp.pad(x, ((0, 0), (0, S_pad - S), (0, 0)))
    pe = _pe_table_cached(S_pad, D, jnp.dtype(x.dtype).name)
    R, W = S_pad // k, k * D
    x2 = x_p.reshape(B, R, W)
    pe2 = pe.reshape(R, W)

    tR, bB = _choose_tiles(R, B, W, itemsize, pack, block_target)
    # v7x megacore: guarantee >= 2 grid steps so both TensorCores get work.
    if (R // tR) * (B // bB) < 2:
        if bB % 2 == 0:
            bB //= 2
        elif tR % (2 * pack) == 0:
            tR //= 2
    # Batch axis MUST stay innermost: the PE block index is then unchanged on
    # consecutive steps and Pallas skips re-DMA of the PE tile.
    grid = (R // tR, B // bB)

    pe_itemsize = jnp.dtype(pe2.dtype).itemsize
    out2 = pl.pallas_call(
        _add_pe_kernel,
        out_shape=jax.ShapeDtypeStruct((B, R, W), x.dtype),
        grid_spec=pltpu.PrefetchScalarGridSpec(
            num_scalar_prefetch=0,
            grid=grid,
            in_specs=[
                # PE tile: index map ignores the batch axis -> batch-invariant.
                pl.BlockSpec((tR, W), lambda r, b: (r, 0)),
                pl.BlockSpec((bB, tR, W), lambda r, b: (b, r, 0)),
            ],
            out_specs=pl.BlockSpec((bB, tR, W), lambda r, b: (b, r, 0)),
        ),
        compiler_params=pltpu.CompilerParams(
            dimension_semantics=("parallel", "parallel"),
            vmem_limit_bytes=vmem_limit),
        cost_estimate=pl.CostEstimate(
            flops=B * S_pad * D,
            transcendentals=0,
            bytes_accessed=2 * B * S_pad * D * itemsize + S_pad * D * pe_itemsize),
    )(pe2, x2)

    out = out2.reshape(B, S_pad, D)
    return out[:, :S, :] if S_pad != S else out


# ----------------------------------------------------------------------------
# Pure-JAX reference of the (intended) PyTorch forward.
# ----------------------------------------------------------------------------
def _reference(x: jax.Array, d_model: int) -> jax.Array:
    B, S, D = x.shape
    position = jnp.arange(S, dtype=jnp.float32)[:, None]
    denominator = jnp.exp(jnp.arange(0, D, 2, dtype=jnp.float32)
                          * (-math.log(10000.0) / d_model))
    pe = jnp.zeros((S, D), jnp.float32)
    pe = pe.at[:, 0::2].set(jnp.sin(position * denominator))
    pe = pe.at[:, 1::2].set(jnp.cos(position * denominator)[:, : D // 2])
    return (x.astype(jnp.float32) + pe[None]).astype(x.dtype)


if __name__ == "__main__":
    key = jax.random.PRNGKey(0)

    # Test 1: module-sized small shape (B=2, S=8, D=32) -> lane-dense fusing
    # (last dim 4*32 = 128) + batch blocking / grid-split path.
    d_model, seq_len, batch = 32, 8, 2
    x1 = jax.random.normal(key, (batch, seq_len, d_model), dtype=jnp.float32)
    o1 = jax.block_until_ready(
        positional_embedding(x1, seq_len=seq_len, d_model=d_model, dropout=0.1))
    r1 = _reference(x1, d_model)
    assert o1.shape == x1.shape and o1.dtype == x1.dtype
    assert jnp.allclose(o1, r1, atol=1e-5, rtol=1e-5), "mismatch (test 1)"

    # Test 2: row-tiled grid + PE-reuse path (force tiny blocks).
    x2 = jax.random.normal(jax.random.PRNGKey(0), (2, 32, 128), dtype=jnp.float32)
    o2 = jax.block_until_ready(
        positional_embedding(x2, seq_len=32, d_model=128, dropout=0.0,
                             block_target_bytes=8 * 128 * 4))
    r2 = _reference(x2, 128)
    assert jnp.allclose(o2, r2, atol=1e-5, rtol=1e-5), "mismatch (test 2)"

    # Test 3: ragged sequence (S not a multiple of the fuse factor) -> pad path.
    x3 = jax.random.normal(jax.random.PRNGKey(0), (2, 7, 32), dtype=jnp.float32)
    o3 = jax.block_until_ready(
        positional_embedding(x3, seq_len=16, d_model=32, dropout=0.0))
    r3 = _reference(x3, 32)
    assert o3.shape == x3.shape
    assert jnp.allclose(o3, r3, atol=1e-5, rtol=1e-5), "mismatch (test 3)"

    # Test 4: bf16 input -> PE table cast to bf16 (half the PE HBM traffic).
    x4 = jax.random.normal(jax.random.PRNGKey(0), (2, 16, 64), dtype=jnp.bfloat16)
    o4 = jax.block_until_ready(
        positional_embedding(x4, seq_len=16, d_model=64, dropout=0.0))
    r4 = _reference(x4, 64)
    assert o4.dtype == jnp.bfloat16
    assert jnp.allclose(o4.astype(jnp.float32), r4.astype(jnp.float32),
                        atol=5e-2, rtol=2e-2), "mismatch (test 4)"

    print("KERNEL_OK")
</pallas_src>

<mosaic_0001>
module attributes {stable_mosaic.version = 11 : i64} {
  func.func @_add_pe_kernel(%arg0: i32, %arg1: i32, %arg2: memref<2x128xf32, #tpu.memory_space<vmem>>, %arg3: memref<1x2x128xf32, #tpu.memory_space<vmem>>, %arg4: memref<1x2x128xf32, #tpu.memory_space<vmem>>) attributes {dimension_semantics = [#tpu.dimension_semantics<parallel>, #tpu.dimension_semantics<parallel>], iteration_bounds = array<i64: 1, 2>, scalar_prefetch = 0 : i64, scratch_operands = 0 : i64, tpu.core_type = #tpu.core_type<tc>, window_params = [{transform_indices = @transform_0, window_bounds = array<i64: 2, 128>}, {transform_indices = @transform_1, window_bounds = array<i64: 1, 2, 128>}, {transform_indices = @transform_2, window_bounds = array<i64: 1, 2, 128>}]} {
    %c0 = arith.constant 0 : index
    %c0_0 = arith.constant 0 : index
    %0 = vector.load %arg2[%c0, %c0_0] : memref<2x128xf32, #tpu.memory_space<vmem>>, vector<2x128xf32>
    %1 = vector.shape_cast %0 : vector<2x128xf32> to vector<1x2x128xf32>
    %c0_1 = arith.constant 0 : index
    %c0_2 = arith.constant 0 : index
    %c0_3 = arith.constant 0 : index
    %2 = vector.load %arg3[%c0_1, %c0_2, %c0_3] : memref<1x2x128xf32, #tpu.memory_space<vmem>>, vector<1x2x128xf32>
    %3 = arith.addf %2, %1 : vector<1x2x128xf32>
    %c0_4 = arith.constant 0 : index
    %c0_5 = arith.constant 0 : index
    %c0_6 = arith.constant 0 : index
    %4 = vector.load %arg4[%c0_4, %c0_5, %c0_6] : memref<1x2x128xf32, #tpu.memory_space<vmem>>, vector<1x2x128xf32>
    tpu.vector_store %arg4[%c0_4, %c0_5, %c0_6], %3 {strides = array<i32>} : memref<1x2x128xf32, #tpu.memory_space<vmem>>, vector<1x2x128xf32>,
    return
  }
  func.func @transform_0(%arg0: i32, %arg1: i32) -> (i32, i32) {
    %c0_i32 = arith.constant 0 : i32
    %c0_i32_0 = arith.constant 0 : i32
    return %arg0, %c0_i32 : i32, i32
  }
  func.func @transform_1(%arg0: i32, %arg1: i32) -> (i32, i32, i32) {
    %c0_i32 = arith.constant 0 : i32
    %c0_i32_0 = arith.constant 0 : i32
    return %arg1, %arg0, %c0_i32 : i32, i32, i32
  }
  func.func @transform_2(%arg0: i32, %arg1: i32) -> (i32, i32, i32) {
    %c0_i32 = arith.constant 0 : i32
    %c0_i32_0 = arith.constant 0 : i32
    return %arg1, %arg0, %c0_i32 : i32, i32, i32
  }
}

</mosaic_0001>

<llo_original>
// kernel: tpu_custom_call.1
$region0: #{tpu_custom_call.1}
  #allocation0 [shape = 'u32[]', space=smem, size = 0x4, offset = 0x4, fixed_abs, tag = 'smem constant byte address 0x4 - core index']
  #allocation1 [shape = 'u32[144,128]{1,0:T(1,128)}', space=vmem, size = 0x12000, scoped, tag = 'internal scratch']
  %s0 = inlined_call_operand.hbm [shape: f32[2,128], index: 0, kind: input, shape index: {}]
  %s1 = inlined_call_operand.hbm [shape: f32[2,2,128], index: 1, kind: input, shape index: {}]
  %s2 = inlined_call_operand.hbm [shape: f32[2,2,128], index: 2, kind: output, shape index: {}]
  %s3 = sld [smem:[#allocation0]]
  $region49: #{tpu_custom_call.1} parent=0
    _
  %s5 = ssub.s32 1, %s3
  %s6 = scalar_select 0, %s5, %s3
  $region1: #{tpu_custom_call.1} parent=0
    #allocation2 [shape = 'u8[1024]{0}', space=vmem, size = 0x400, scoped, tag = 'input window, operand 0, single buffered']
    #allocation3 [shape = 's32[2]{0}', space=sflag, size = 0x8, scoped, tag = 'scoped memory for tpu_custom_call.1']
    #allocation4 [shape = 's32[2]{0}', space=sflag, size = 0x8, scoped, tag = 'scoped memory for tpu_custom_call.1']
    #allocation5 [shape = 'u8[2048]{0}', space=vmem, size = 0x800, scoped, tag = 'input window, operand 1']
    #allocation6 [shape = 's32[2]{0}', space=sflag, size = 0x8, scoped, tag = 'scoped memory for tpu_custom_call.1']
    #allocation7 [shape = 'u8[2048]{0}', space=vmem, size = 0x800, scoped, tag = 'output window, operand 0']
    %7 = vsyncpa [#allocation3], 0
    %8 = vsyncpa [#allocation6], 0
    %s9 = scalar_lea.sflag [#allocation6], 1
    %10 = vsyncpa %s9, 0
    %11 = vsyncpa [#allocation4], 0
    %s12 = scalar_lea.sflag [#allocation4], 1
    %13 = vsyncpa %s12, 0
    loop: start=0, step=1, limit=4
    $region2: #{tpu_custom_call.1} parent=1 // loop_pre_header
      _
    $region3: #{tpu_custom_call.1} parent=1 // loop_header
      %s15 = sphi 0, %s19
      %p16 = scmp.ge.s32.totalorder %s15, 4
      %s22 = sphi 0, %s34
      %s23 = sphi 0, %s30
      %s24 = sphi 0, %s22
      %s25 = sphi 0, %s23
      %s26 = sphi 0, %s24
      %s27 = sphi 0, %s25
      %s37 = sphi 0, %s39
      %s40 = sphi 0, %s37
      %s41 = sphi 0, %s40
      %s57 = sphi 0, %s41
      %s65 = sphi 0, %s67
      %s68 = sphi 0, %s65
      %s69 = sphi 0, %s68
      %s85 = sphi 0, %s69
      %s93 = sphi 0, %s95
      %s96 = sphi 0, %s93
      %s97 = sphi 0, %s96
      %s113 = sphi 0, %s97
    $region4: #{tpu_custom_call.1} parent=1 // loop_header_branch
      %18 = sbr.rel (%p16) target = $region8
    $region5: #{tpu_custom_call.1} parent=1 // loop_body
      %s20 = ssub.s32 %s15, 1
      %s21 = ssub.s32 %s15, 2
      %s28 = sadd.s32 1, %s23
      %p29 = scmp.ge.s32.totalorder %s28, 2
      %s30 = scalar_select %p29, 0, %s28
      %s31 = sadd.s32 1, %s22
      %s32 = scalar_select %p29, %s31, %s22
      %p33 = scmp.ge.s32.totalorder %s32, 1
      %s34 = scalar_select %p33, 0, %s32
      %s35 = ssub.s32 %s22, %s34
      %p36 = scmp.eq.s32.totalorder %s35, 0
      %s38 = sadd.s32 %s37, 1
      %s39 = scalar_select %p36, %s37, %s38
      %p42 = pneg %p36
      %p43 = scmp.eq.s32.totalorder %s15, 1
      %p44 = por %p42, %p43
      %p45 = scmp.ne.s32.totalorder %s37, %s40
      %p46 = scmp.eq.s32.totalorder %s15, 0
      %p47 = por %p45, %p46
      %p48 = scmp.ne.s32.totalorder %s37, %s40
      %p49 = scmp.eq.s32.totalorder %s20, 1
      %p50 = por %p48, %p49
      %p51 = scmp.ne.s32.totalorder %s40, %s41
      %p52 = scmp.eq.s32.totalorder %s20, 0
      %p53 = por %p51, %p52
      %p54 = scmp.ne.s32.totalorder %s40, %s41
      %p55 = scmp.eq.s32.totalorder %s21, 1
      %p56 = por %p54, %p55
      %p58 = scmp.ne.s32.totalorder %s41, %s57
      %p59 = scmp.eq.s32.totalorder %s21, 0
      %p60 = por %p58, %p59
      %s61 = ssub.s32 %s23, %s30
      %s62 = ssub.s32 %s22, %s34
      %s63 = sor.u32 %s61, %s62
      %p64 = scmp.eq.s32.totalorder %s63, 0
      %s66 = sadd.s32 %s65, 1
      %s67 = scalar_select %p64, %s65, %s66
      %p70 = pneg %p64
      %p71 = scmp.eq.s32.totalorder %s15, 1
      %p72 = por %p70, %p71
      %p73 = scmp.ne.s32.totalorder %s65, %s68
      %p74 = scmp.eq.s32.totalorder %s15, 0
      %p75 = por %p73, %p74
      %p76 = scmp.ne.s32.totalorder %s65, %s68
      %p77 = scmp.eq.s32.totalorder %s20, 1
      %p78 = por %p76, %p77
      %p79 = scmp.ne.s32.totalorder %s68, %s69
      %p80 = scmp.eq.s32.totalorder %s20, 0
      %p81 = por %p79, %p80
      %p82 = scmp.ne.s32.totalorder %s68, %s69
      %p83 = scmp.eq.s32.totalorder %s21, 1
      %p84 = por %p82, %p83
      %p86 = scmp.ne.s32.totalorder %s69, %s85
      %p87 = scmp.eq.s32.totalorder %s21, 0
      %p88 = por %p86, %p87
      %s89 = ssub.s32 %s23, %s30
      %s90 = ssub.s32 %s22, %s34
      %s91 = sor.u32 %s89, %s90
      %p92 = scmp.eq.s32.totalorder %s91, 0
      %s94 = sadd.s32 %s93, 1
      %s95 = scalar_select %p92, %s93, %s94
      %p98 = pneg %p92
      %p99 = scmp.eq.s32.totalorder %s15, 1
      %p100 = por %p98, %p99
      %p101 = scmp.ne.s32.totalorder %s93, %s96
      %p102 = scmp.eq.s32.totalorder %s15, 0
      %p103 = por %p101, %p102
      %p104 = scmp.ne.s32.totalorder %s93, %s96
      %p105 = scmp.eq.s32.totalorder %s20, 1
      %p106 = por %p104, %p105
      %p107 = scmp.ne.s32.totalorder %s96, %s97
      %p108 = scmp.eq.s32.totalorder %s20, 0
      %p109 = por %p107, %p108
      %p110 = scmp.ne.s32.totalorder %s96, %s97
      %p111 = scmp.eq.s32.totalorder %s21, 1
      %p112 = por %p110, %p111
      %p114 = scmp.ne.s32.totalorder %s97, %s113
      %p115 = scmp.eq.s32.totalorder %s21, 0
      %p116 = por %p114, %p115
      %p117 = scmp.le.s32.totalorder 1, %s15
      %p118 = scmp.lt.s32.totalorder %s15, 3
      %p119 = pnand %p117, %p118
      %p120 = pneg %p119
      // Predicated region
      $region9: #{tpu_custom_call.1} parent=5 // pred_check
        _
      $region10: #{tpu_custom_call.1} parent=5 // pred_check_branch
        %122 = sbr.rel (%p119) target = $region12
      $region11: #{tpu_custom_call.1} parent=5 // pred_region
        %s123 = ssub.s32 %s15, 1
        // Predicated region
        $region13: #{tpu_custom_call.1} parent=11 // pred_check
          %p124 = pneg %p53
        $region14: #{tpu_custom_call.1} parent=11 // pred_check_branch
          %126 = sbr.rel (%p124) target = $region16
        $region15: #{tpu_custom_call.1} parent=11 // pred_region
          %s128 = ssub.s32 32, 32
          %129 = vsyncadd [#allocation3], %s128
          %s130 = smul.addr %s24, 32
          %s131 = scalar_lea.hbm %s0, %s130
          %s133 = sshll.u32 [#allocation2], 4
          %s134 = int_to_ptr.vmem [resolvable:$true] %s133
          %136 = dma.hbm_to_vmem [thread:$0]  %s131, 32, %s134, [#allocation3]
        $region16: #{tpu_custom_call.1} parent=11 // pred_fallthru
          _
      $region12: #{tpu_custom_call.1} parent=5 // pred_fallthru
        _
      %p137 = scmp.lt.s32.totalorder %s15, 2
      // Predicated region
      $region17: #{tpu_custom_call.1} parent=5 // pred_check
        %p138 = pneg %p137
      $region18: #{tpu_custom_call.1} parent=5 // pred_check_branch
        %140 = sbr.rel (%p138) target = $region20
      $region19: #{tpu_custom_call.1} parent=5 // pred_region
        // Predicated region
        $region21: #{tpu_custom_call.1} parent=19 // pred_check
          %p141 = pneg %p75
        $region22: #{tpu_custom_call.1} parent=19 // pred_check_branch
          %143 = sbr.rel (%p141) target = $region24
        $region23: #{tpu_custom_call.1} parent=19 // pred_region
          %s144 = sand.u32 %s65, 1
          %s145 = scalar_lea.sflag [#allocation6], %s144
          %s146 = sand.u32 %s65, 1
          %s147 = smul.addr %s146, 2
          %s148 = scalar_lea.vmem [#allocation5], %s147
          %s150 = ssub.s32 32, 32
          %151 = vsyncadd %s145, %s150
          %s152 = sadd.s32 %s22, %s23
          %s153 = smul.addr %s152, 32
          %s154 = scalar_lea.hbm %s1, %s153
          %s156 = sshll.u32 %s148, 4
          %s157 = int_to_ptr.vmem [resolvable:$true] %s156
          %159 = dma.hbm_to_vmem [thread:$0]  %s154, 32, %s157, %s145
        $region24: #{tpu_custom_call.1} parent=19 // pred_fallthru
          _
      $region20: #{tpu_custom_call.1} parent=5 // pred_fallthru
        _
      %p160 = scmp.le.s32.totalorder 1, %s15
      %p161 = scmp.lt.s32.totalorder %s15, 3
      %p162 = pnand %p160, %p161
      %p163 = pneg %p162
      // Predicated region
      $region25: #{tpu_custom_call.1} parent=5 // pred_check
        _
      $region26: #{tpu_custom_call.1} parent=5 // pred_check_branch
        %165 = sbr.rel (%p162) target = $region28
      $region27: #{tpu_custom_call.1} parent=5 // pred_region
        %s166 = ssub.s32 %s15, 1
        // Predicated region
        $region29: #{tpu_custom_call.1} parent=27 // pred_check
          %p167 = pneg %p53
        $region30: #{tpu_custom_call.1} parent=27 // pred_check_branch
          %169 = sbr.rel (%p167) target = $region32
        $region31: #{tpu_custom_call.1} parent=27 // pred_region
          %170 = dma.done [#allocation3], 32
        $region32: #{tpu_custom_call.1} parent=27 // pred_fallthru
          _
        %s171 = sand.u32 %s68, 1
        %s172 = scalar_lea.sflag [#allocation6], %s171
        %s173 = sand.u32 %s68, 1
        %s174 = smul.addr %s173, 2
        %s175 = scalar_lea.vmem [#allocation5], %s174
        // Predicated region
        $region33: #{tpu_custom_call.1} parent=27 // pred_check
          %p176 = pneg %p81
        $region34: #{tpu_custom_call.1} parent=27 // pred_check_branch
          %178 = sbr.rel (%p176) target = $region36
        $region35: #{tpu_custom_call.1} parent=27 // pred_region
          %179 = dma.done %s172, 32
        $region36: #{tpu_custom_call.1} parent=27 // pred_fallthru
          _
        %p180 = pneg %p53
        %p181 = pneg %p50
        %s182 = sand.u32 %s68, 1
        %s183 = scalar_lea.sflag [#allocation6], %s182
        %s184 = sand.u32 %s68, 1
        %s185 = smul.addr %s184, 2
        %s186 = scalar_lea.vmem [#allocation5], %s185
        %p187 = pneg %p81
        %p188 = pneg %p78
        %p189 = pneg %p109
        %p190 = pneg %p106
        %s191 = sand.u32 %s96, 1
        %s192 = scalar_lea.sflag [#allocation4], %s191
        %s193 = sand.u32 %s96, 1
        %s194 = smul.addr %s193, 2
        %s195 = scalar_lea.vmem [#allocation7], %s194
        %v196 = vld [vmem:[#allocation2] sm:$0x3]
        %v197 = vld [vmem:[%s175] sm:$0x3]
        %v198 = vadd.f32 %v197, %v196
        %199 = vst [vmem:[%s195] sm:$0x3] %v198
        %s200 = sand.u32 %s96, 1
        %s201 = scalar_lea.sflag [#allocation4], %s200
        %s202 = sand.u32 %s96, 1
        %s203 = smul.addr %s202, 2
        %s204 = scalar_lea.vmem [#allocation7], %s203
        // Predicated region
        $region37: #{tpu_custom_call.1} parent=27 // pred_check
          %p205 = pneg %p106
        $region38: #{tpu_custom_call.1} parent=27 // pred_check_branch
          %207 = sbr.rel (%p205) target = $region40
        $region39: #{tpu_custom_call.1} parent=27 // pred_region
          %s209 = ssub.s32 32, 32
          %210 = vsyncadd %s201, %s209
          %s211 = sadd.s32 %s24, %s25
          %s212 = smul.addr %s211, 32
          %s213 = scalar_lea.hbm %s2, %s212
          %s215 = sshll.u32 %s204, 4
          %s216 = int_to_ptr.vmem [resolvable:$true] %s215
          %218 = dma.vmem_to_hbm [thread:$0]  %s216, 32, %s213, %s201
        $region40: #{tpu_custom_call.1} parent=27 // pred_fallthru
          _
      $region28: #{tpu_custom_call.1} parent=5 // pred_fallthru
        _
      %p219 = scmp.le.s32.totalorder 2, %s15
      // Predicated region
      $region41: #{tpu_custom_call.1} parent=5 // pred_check
        %p220 = pneg %p219
      $region42: #{tpu_custom_call.1} parent=5 // pred_check_branch
        %222 = sbr.rel (%p220) target = $region44
      $region43: #{tpu_custom_call.1} parent=5 // pred_region
        %s223 = ssub.s32 %s15, 2
        // Predicated region
        $region45: #{tpu_custom_call.1} parent=43 // pred_check
          %p224 = pneg %p112
        $region46: #{tpu_custom_call.1} parent=43 // pred_check_branch
          %226 = sbr.rel (%p224) target = $region48
        $region47: #{tpu_custom_call.1} parent=43 // pred_region
          %s227 = sand.u32 %s97, 1
          %s228 = scalar_lea.sflag [#allocation4], %s227
          %s229 = sand.u32 %s97, 1
          %s230 = smul.addr %s229, 2
          %s231 = scalar_lea.vmem [#allocation7], %s230
          %232 = dma.done %s228, 32
        $region48: #{tpu_custom_call.1} parent=43 // pred_fallthru
          _
      $region44: #{tpu_custom_call.1} parent=5 // pred_fallthru
        _
    $region6: #{tpu_custom_call.1} parent=1 // loop_footer
      %s19 = sadd.s32 1, %s15
    $region7: #{tpu_custom_call.1} parent=1 // loop_footer_branch
      %14 = sbr.rel target = $region3
    $region8: #{tpu_custom_call.1} parent=1 // loop_exit
      _
    %233 = vsyncpa [#allocation3], 1
    %s234 = scalar_lea.sflag [#allocation3], 1
    %235 = vsyncpa %s234, 1
    %236 = vsyncpa [#allocation6], 1
    %s237 = scalar_lea.sflag [#allocation6], 1
    %238 = vsyncpa %s237, 1
    %239 = vsyncpa [#allocation4], 1
    %s240 = scalar_lea.sflag [#allocation4], 1
    %241 = vsyncpa %s240, 1

</llo_original>
